<compile_context>
chip_gen: v5e
topology: v5e:2x2
jax: 0.10.0
libtpu: 0.0.40
codegen_flags: <defaults>
</compile_context>

<pallas_src>
import functools

import jax
import jax.numpy as jnp
from jax.experimental import pallas as pl
from jax.experimental.pallas import tpu as pltpu

BN_EPS = 1e-5


# --------------------------------------------------------------------------
# Pass 1: partial per-channel sum / sum-of-squares of
#         y = [conv1(x_even_lattice); conv2(x_odd_lattice)]
# One partial per (image-group, pixel-tile) grid step -> both axes "parallel".
# --------------------------------------------------------------------------
def _stats_kernel(x1_ref, x2_ref, w1_ref, w2_ref, sum_ref, sq_ref, *,
                  c_half, nb, tm, m_sp, ragged):
    # x1_ref, x2_ref : [nb, C_in, TM]   (pixels on the lane axis)
    # w1_ref, w2_ref : [C_half, C_in]
    # sum_ref, sq_ref: [1, 1, C_out, 1] per-step partial (pure store, no RMW)
    w1 = w1_ref[...]
    w2 = w2_ref[...]

    if ragged:
        t = pl.program_id(1)
        valid = m_sp - t * tm                                     # pixels in range
        lane = jax.lax.broadcasted_iota(jnp.int32, (1, tm), 1)
        mask = lane < valid

    s1 = jnp.zeros((c_half, 1), jnp.float32)
    s2 = jnp.zeros((c_half, 1), jnp.float32)
    q1 = jnp.zeros((c_half, 1), jnp.float32)
    q2 = jnp.zeros((c_half, 1), jnp.float32)

    for b in range(nb):                                           # small static unroll
        y1 = jnp.dot(w1, x1_ref[b], preferred_element_type=jnp.float32)
        y2 = jnp.dot(w2, x2_ref[b], preferred_element_type=jnp.float32)
        if ragged:
            y1 = jnp.where(mask, y1, 0.0)
            y2 = jnp.where(mask, y2, 0.0)
        s1 += jnp.sum(y1, axis=-1, keepdims=True)
        s2 += jnp.sum(y2, axis=-1, keepdims=True)
        q1 += jnp.sum(y1 * y1, axis=-1, keepdims=True)
        q2 += jnp.sum(y2 * y2, axis=-1, keepdims=True)

    # Channel "concat" = disjoint row ranges (no copy).
    sum_ref[0, 0, :c_half, :] = s1
    sum_ref[0, 0, c_half:, :] = s2
    sq_ref[0, 0, :c_half, :] = q1
    sq_ref[0, 0, c_half:, :] = q2


# --------------------------------------------------------------------------
# Pass 2: recompute the cheap 1x1-conv tiles, apply the fused BN scale/shift
# --------------------------------------------------------------------------
def _norm_kernel(x1_ref, x2_ref, w1_ref, w2_ref, scale_ref, shift_ref, o_ref, *,
                 c_half, nb):
    # scale_ref, shift_ref: [C_out, 1] (f32), broadcast over the lane axis.
    # o_ref: [nb, C_out, TM] -> NCHW output tile, written lane-dense.
    w1 = w1_ref[...]
    w2 = w2_ref[...]
    sc1 = scale_ref[:c_half, :]
    sc2 = scale_ref[c_half:, :]
    sh1 = shift_ref[:c_half, :]
    sh2 = shift_ref[c_half:, :]
    for b in range(nb):
        y1 = jnp.dot(w1, x1_ref[b], preferred_element_type=jnp.float32)
        y2 = jnp.dot(w2, x2_ref[b], preferred_element_type=jnp.float32)
        o_ref[b, :c_half, :] = (y1 * sc1 + sh1).astype(o_ref.dtype)
        o_ref[b, c_half:, :] = (y2 * sc2 + sh2).astype(o_ref.dtype)


# --------------------------------------------------------------------------
# Tiling / VMEM accounting
# --------------------------------------------------------------------------
def _round_up(v, m):
    return -(-v // m) * m


def _sublane_quantum(itemsize):
    return 8 * max(1, 4 // itemsize)


def _choose_tiling(n, c_in, c_out, m_sp, in_bytes, out_bytes, budget, *, max_nb=8):
    """Pick (images-per-step, pixel-tile) under a VMEM byte budget.

    Footprint accounts for (8,128) padding and double buffering. Returns
    (nb, tm, n_t, ragged, step_bytes)."""
    cip = _round_up(c_in, _sublane_quantum(in_bytes))
    cop = _round_up(c_out, _sublane_quantum(out_bytes)) if out_bytes else 0

    def step_bytes(nb, tm):
        tmp = _round_up(tm, 128)
        return (2 * nb * cip * tmp * in_bytes + nb * cop * tmp * out_bytes) * 2

    # Pixel tile: whole image if it fits, else largest 128-multiple that does
    # (the ragged trailing tile is masked in the stats kernel / clipped on store).
    if step_bytes(1, m_sp) <= budget:
        tm = m_sp
    else:
        per128 = step_bytes(1, 128)
        tm = 128 * max(1, budget // per128)
        tm = min(tm, _round_up(m_sp, 128))
    n_t = -(-m_sp // tm)
    ragged = (m_sp % tm) != 0

    # Pack several images per step when a single image is a tiny step, so the
    # ~0.35 us per-step pipeline overhead is amortized; keep >=2 grid steps when
    # there is more than one image of work (megacore friendliness).
    nb = 1
    if n_t == 1:
        for cand in range(min(n, max_nb), 0, -1):
            if n % cand != 0:
                continue
            if step_bytes(cand, tm) > budget:
                continue
            if n >= 2 and cand != 1 and (n // cand) < 2:
                continue
            nb = cand
            break
    return nb, tm, n_t, ragged, step_bytes(nb, tm)


# --------------------------------------------------------------------------
# Forward
# --------------------------------------------------------------------------
def factorized_forward(x, w1, w2, gamma, beta, *,
                       compute_dtype=jnp.bfloat16, out_dtype=jnp.float32):
    """x: [N, C_in, H, W] (NCHW). Returns [N, C_out, H//2, W//2] in `out_dtype`."""
    n, c_in, h, w = x.shape
    c_half = w1.shape[0]
    c_out = 2 * c_half
    assert w2.shape == w1.shape
    assert gamma.shape[0] == c_out and beta.shape[0] == c_out
    assert h % 2 == 0 and w % 2 == 0, "Factorized assumes even spatial dims"
    ho, wo = h // 2, w // 2
    m_sp = ho * wo                  # pixels per image after stride 2
    m_total = n * m_sp              # BN sample count

    # Stride-2 lattices for the two conv paths (conv2 sees x[:, :, 1:, 1:]).
    # Slice + cast fused in one XLA op -> materialized copies are half-size bf16.
    # TODO(synk): do this lattice gather inside the kernel (strided in-kernel load)
    # so x is only read by the pallas_calls.
    x1 = x[:, :, 0::2, 0::2].reshape(n, c_in, m_sp).astype(compute_dtype)
    x2 = x[:, :, 1::2, 1::2].reshape(n, c_in, m_sp).astype(compute_dtype)

    # Conv weights [C_half, C_in, 1, 1] -> [C_half, C_in] (channel-major matmul).
    w1_m = w1.reshape(c_half, c_in).astype(compute_dtype)
    w2_m = w2.reshape(c_half, c_in).astype(compute_dtype)

    in_bytes = jnp.dtype(compute_dtype).itemsize
    out_bytes = jnp.dtype(out_dtype).itemsize
    try:
        vmem_cap = int(pltpu.get_tpu_info().vmem_capacity_bytes)
    except Exception:
        vmem_cap = 64 * 1024 * 1024                      # v7x floor
    budget = max(8 << 20, min(int(vmem_cap * 0.55), vmem_cap - (24 << 20)))

    # Small resident blocks: weights, scale/shift, stats (double-buffered).
    fixed_bytes = 2 * (2 * c_half * c_in * in_bytes + 2 * c_out * 4 + 4 * c_out * 4)

    conv_flops = 2 * 2 * m_total * c_in * c_half
    bytes_x = 2 * m_total * c_in * in_bytes

    w_spec = pl.BlockSpec((c_half, c_in), lambda i, t: (0, 0))

    # ---------------- Pass 1: partial per-channel sum / sumsq ----------------
    # No TM-wide output -> pass 1 gets a larger pixel-tile budget than pass 2.
    nb1, tm1, nt1, rag1, sb1 = _choose_tiling(n, c_in, c_out, m_sp, in_bytes, 0, budget)
    grid1 = (n // nb1, nt1)
    x_spec1 = pl.BlockSpec((nb1, c_in, tm1), lambda i, t: (i, 0, t))
    stats_spec = pl.BlockSpec((1, 1, c_out, 1), lambda i, t: (i, t, 0, 0))
    vmem1 = min(vmem_cap, sb1 + fixed_bytes + (16 << 20))

    part_sum, part_sq = pl.pallas_call(
        functools.partial(_stats_kernel, c_half=c_half, nb=nb1, tm=tm1,
                          m_sp=m_sp, ragged=rag1),
        out_shape=(jax.ShapeDtypeStruct((grid1[0], nt1, c_out, 1), jnp.float32),
                   jax.ShapeDtypeStruct((grid1[0], nt1, c_out, 1), jnp.float32)),
        grid_spec=pltpu.PrefetchScalarGridSpec(
            num_scalar_prefetch=0,
            grid=grid1,
            in_specs=[x_spec1, x_spec1, w_spec, w_spec],
            out_specs=(stats_spec, stats_spec)),
        compiler_params=pltpu.CompilerParams(
            dimension_semantics=("parallel", "parallel"),
            vmem_limit_bytes=vmem1),
        cost_estimate=pl.CostEstimate(
            flops=conv_flops, transcendentals=0,
            bytes_accessed=bytes_x + 2 * grid1[0] * nt1 * c_out * 4),
    )(x1, x2, w1_m, w2_m)

    # Tiny cross-block combine + mean/var/rsqrt (f32, in the wrapper).
    total_sum = jnp.sum(part_sum[..., 0], axis=(0, 1))             # [C_out]
    total_sq = jnp.sum(part_sq[..., 0], axis=(0, 1))               # [C_out]
    mean = total_sum / m_total
    var = jnp.maximum(total_sq / m_total - mean * mean, 0.0)       # biased var (BN training)
    inv_std = jax.lax.rsqrt(var + BN_EPS)
    g = gamma.astype(jnp.float32)
    b = beta.astype(jnp.float32)
    scale = (g * inv_std).reshape(c_out, 1)
    shift = (b - mean * g * inv_std).reshape(c_out, 1)

    # ------------- Pass 2: normalize + write NCHW output tiles -------------
    nb2, tm2, nt2, _, sb2 = _choose_tiling(n, c_in, c_out, m_sp,
                                           in_bytes, out_bytes, budget)
    grid2 = (n // nb2, nt2)
    x_spec2 = pl.BlockSpec((nb2, c_in, tm2), lambda i, t: (i, 0, t))
    vec_spec = pl.BlockSpec((c_out, 1), lambda i, t: (0, 0))
    out_spec = pl.BlockSpec((nb2, c_out, tm2), lambda i, t: (i, 0, t))
    vmem2 = min(vmem_cap, sb2 + fixed_bytes + (16 << 20))

    out = pl.pallas_call(
        functools.partial(_norm_kernel, c_half=c_half, nb=nb2),
        out_shape=jax.ShapeDtypeStruct((n, c_out, m_sp), out_dtype),
        grid_spec=pltpu.PrefetchScalarGridSpec(
            num_scalar_prefetch=0,
            grid=grid2,
            in_specs=[x_spec2, x_spec2, w_spec, w_spec, vec_spec, vec_spec],
            out_specs=out_spec),
        compiler_params=pltpu.CompilerParams(
            dimension_semantics=("parallel", "parallel"),
            vmem_limit_bytes=vmem2),
        cost_estimate=pl.CostEstimate(
            flops=conv_flops, transcendentals=0,
            bytes_accessed=bytes_x + m_total * c_out * out_bytes),
    )(x1, x2, w1_m, w2_m, scale, shift)

    return out.reshape(n, c_out, ho, wo)       # metadata-only reshape, already NCHW


# --------------------------------------------------------------------------
# Pure-JAX reference reproducing the PyTorch semantics (training-mode BN)
# --------------------------------------------------------------------------
def _reference_forward(x, w1, w2, gamma, beta):
    y1 = jax.lax.conv_general_dilated(
        x, w1, window_strides=(2, 2), padding="VALID",
        dimension_numbers=("NCHW", "OIHW", "NCHW"))
    y2 = jax.lax.conv_general_dilated(
        x[:, :, 1:, 1:], w2, window_strides=(2, 2), padding="VALID",
        dimension_numbers=("NCHW", "OIHW", "NCHW"))
    y = jnp.concatenate([y1, y2], axis=1)
    mean = jnp.mean(y, axis=(0, 2, 3), keepdims=True)
    var = jnp.mean((y - mean) ** 2, axis=(0, 2, 3), keepdims=True)
    y_norm = (y - mean) * jax.lax.rsqrt(var + BN_EPS)
    return gamma.reshape(1, -1, 1, 1) * y_norm + beta.reshape(1, -1, 1, 1)


if __name__ == "__main__":
    # Small shapes consistent with the module (stride=2 branch of Factorized).
    N, C_IN, H, W = 2, 4, 16, 16
    C_OUT = 8                      # must be even; each conv produces C_OUT // 2
    C_HALF = C_OUT // 2

    key = jax.random.PRNGKey(0)
    kx, kw1, kw2 = jax.random.split(key, 3)

    x = jax.random.normal(kx, (N, C_IN, H, W), dtype=jnp.float32)
    w1 = jax.random.normal(kw1, (C_HALF, C_IN, 1, 1), dtype=jnp.float32) * 0.1
    w2 = jax.random.normal(kw2, (C_HALF, C_IN, 1, 1), dtype=jnp.float32) * 0.1
    gamma = jnp.ones((C_OUT,), dtype=jnp.float32)   # BatchNorm2d affine defaults
    beta = jnp.zeros((C_OUT,), dtype=jnp.float32)

    ref = _reference_forward(x, w1, w2, gamma, beta)

    fwd = jax.jit(factorized_forward, static_argnames=("compute_dtype", "out_dtype"))

    # Default path: bf16 activations/weights (f32 accumulation + BN math): loose check.
    out_bf16 = jax.block_until_ready(fwd(x, w1, w2, gamma, beta))
    assert out_bf16.shape == (N, C_OUT, H // 2, W // 2), out_bf16.shape
    assert jnp.allclose(out_bf16, ref, atol=5e-2, rtol=5e-2), "bf16 mismatch vs reference"

    # Full-precision path: tight check against the reference.
    out_f32 = jax.block_until_ready(
        fwd(x, w1, w2, gamma, beta, compute_dtype=jnp.float32))
    assert out_f32.shape == (N, C_OUT, H // 2, W // 2), out_f32.shape
    assert jnp.allclose(out_f32, ref, atol=1e-4, rtol=1e-4), "f32 mismatch vs reference"

    print("KERNEL_OK")
</pallas_src>

<mosaic_0001>
module attributes {stable_mosaic.version = 11 : i64} {
  func.func @_stats_kernel(%arg0: i32, %arg1: i32, %arg2: memref<1x4x64xbf16, #tpu.memory_space<vmem>>, %arg3: memref<1x4x64xbf16, #tpu.memory_space<vmem>>, %arg4: memref<4x4xbf16, #tpu.memory_space<vmem>>, %arg5: memref<4x4xbf16, #tpu.memory_space<vmem>>, %arg6: memref<1x1x8x1xf32, #tpu.memory_space<vmem>>, %arg7: memref<1x1x8x1xf32, #tpu.memory_space<vmem>>) attributes {dimension_semantics = [#tpu.dimension_semantics<parallel>, #tpu.dimension_semantics<parallel>], iteration_bounds = array<i64: 2, 1>, scalar_prefetch = 0 : i64, scratch_operands = 0 : i64, tpu.core_type = #tpu.core_type<tc>, window_params = [{transform_indices = @transform_0, window_bounds = array<i64: 1, 4, 64>}, {transform_indices = @transform_1, window_bounds = array<i64: 1, 4, 64>}, {pipeline_mode = #tpu.pipeline_mode<synchronous>, transform_indices = @transform_2, window_bounds = array<i64: 4, 4>}, {pipeline_mode = #tpu.pipeline_mode<synchronous>, transform_indices = @transform_3, window_bounds = array<i64: 4, 4>}, {transform_indices = @transform_4, window_bounds = array<i64: 1, 1, 8, 1>}, {transform_indices = @transform_5, window_bounds = array<i64: 1, 1, 8, 1>}]} {
    %c0 = arith.constant 0 : index
    %c0_0 = arith.constant 0 : index
    %0 = vector.load %arg4[%c0, %c0_0] : memref<4x4xbf16, #tpu.memory_space<vmem>>, vector<4x4xbf16>
    %c0_1 = arith.constant 0 : index
    %c0_2 = arith.constant 0 : index
    %1 = vector.load %arg5[%c0_1, %c0_2] : memref<4x4xbf16, #tpu.memory_space<vmem>>, vector<4x4xbf16>
    %cst = arith.constant 0.000000e+00 : f32
    %2 = vector.broadcast %cst : f32 to vector<4x1xf32>
    %cst_3 = arith.constant 0.000000e+00 : f32
    %3 = vector.broadcast %cst_3 : f32 to vector<4x1xf32>
    %cst_4 = arith.constant 0.000000e+00 : f32
    %4 = vector.broadcast %cst_4 : f32 to vector<4x1xf32>
    %cst_5 = arith.constant 0.000000e+00 : f32
    %5 = vector.broadcast %cst_5 : f32 to vector<4x1xf32>
    %c0_6 = arith.constant 0 : index
    %c0_7 = arith.constant 0 : index
    %c0_8 = arith.constant 0 : index
    %6 = vector.load %arg2[%c0_6, %c0_7, %c0_8] : memref<1x4x64xbf16, #tpu.memory_space<vmem>>, vector<1x4x64xbf16>
    %7 = vector.shape_cast %6 : vector<1x4x64xbf16> to vector<4x64xbf16>
    %cst_9 = arith.constant dense<0.000000e+00> : vector<4x64xf32>
    %8 = tpu.matmul %0, %7, %cst_9 {dimension_numbers = #tpu.dot_dimension_numbers<[1], [0], [0], [1], [0, 0, 1, 1], [], []>} : vector<4x4xbf16>, vector<4x64xbf16>, vector<4x64xf32> -> vector<4x64xf32>
    %c0_10 = arith.constant 0 : index
    %c0_11 = arith.constant 0 : index
    %c0_12 = arith.constant 0 : index
    %9 = vector.load %arg3[%c0_10, %c0_11, %c0_12] : memref<1x4x64xbf16, #tpu.memory_space<vmem>>, vector<1x4x64xbf16>
    %10 = vector.shape_cast %9 : vector<1x4x64xbf16> to vector<4x64xbf16>
    %cst_13 = arith.constant dense<0.000000e+00> : vector<4x64xf32>
    %11 = tpu.matmul %1, %10, %cst_13 {dimension_numbers = #tpu.dot_dimension_numbers<[1], [0], [0], [1], [0, 0, 1, 1], [], []>} : vector<4x4xbf16>, vector<4x64xbf16>, vector<4x64xf32> -> vector<4x64xf32>
    %cst_14 = arith.constant dense<0.000000e+00> : vector<4xf32>
    %12 = vector.multi_reduction <add>, %8, %cst_14 [1] : vector<4x64xf32> to vector<4xf32>
    %13 = vector.shape_cast %12 : vector<4xf32> to vector<4x1xf32>
    %14 = arith.addf %2, %13 : vector<4x1xf32>
    %cst_15 = arith.constant dense<0.000000e+00> : vector<4xf32>
    %15 = vector.multi_reduction <add>, %11, %cst_15 [1] : vector<4x64xf32> to vector<4xf32>
    %16 = vector.shape_cast %15 : vector<4xf32> to vector<4x1xf32>
    %17 = arith.addf %3, %16 : vector<4x1xf32>
    %18 = arith.mulf %8, %8 : vector<4x64xf32>
    %cst_16 = arith.constant dense<0.000000e+00> : vector<4xf32>
    %19 = vector.multi_reduction <add>, %18, %cst_16 [1] : vector<4x64xf32> to vector<4xf32>
    %20 = vector.shape_cast %19 : vector<4xf32> to vector<4x1xf32>
    %21 = arith.addf %4, %20 : vector<4x1xf32>
    %22 = arith.mulf %11, %11 : vector<4x64xf32>
    %cst_17 = arith.constant dense<0.000000e+00> : vector<4xf32>
    %23 = vector.multi_reduction <add>, %22, %cst_17 [1] : vector<4x64xf32> to vector<4xf32>
    %24 = vector.shape_cast %23 : vector<4xf32> to vector<4x1xf32>
    %25 = arith.addf %5, %24 : vector<4x1xf32>
    %c0_18 = arith.constant 0 : index
    %c0_19 = arith.constant 0 : index
    %c0_20 = arith.constant 0 : index
    %c0_21 = arith.constant 0 : index
    %26 = vector.load %arg6[%c0_18, %c0_19, %c0_20, %c0_21] : memref<1x1x8x1xf32, #tpu.memory_space<vmem>>, vector<1x1x4x1xf32>
    %27 = vector.shape_cast %26 : vector<1x1x4x1xf32> to vector<4x1xf32>
    %28 = vector.shape_cast %14 : vector<4x1xf32> to vector<1x1x4x1xf32>
    tpu.vector_store %arg6[%c0_18, %c0_19, %c0_20, %c0_21], %28 {strides = array<i32>} : memref<1x1x8x1xf32, #tpu.memory_space<vmem>>, vector<1x1x4x1xf32>,
    %c0_22 = arith.constant 0 : index
    %c0_23 = arith.constant 0 : index
    %c4 = arith.constant 4 : index
    %c0_24 = arith.constant 0 : index
    %29 = vector.load %arg6[%c0_22, %c0_23, %c4, %c0_24] : memref<1x1x8x1xf32, #tpu.memory_space<vmem>>, vector<1x1x4x1xf32>
    %30 = vector.shape_cast %29 : vector<1x1x4x1xf32> to vector<4x1xf32>
    %31 = vector.shape_cast %17 : vector<4x1xf32> to vector<1x1x4x1xf32>
    tpu.vector_store %arg6[%c0_22, %c0_23, %c4, %c0_24], %31 {strides = array<i32>} : memref<1x1x8x1xf32, #tpu.memory_space<vmem>>, vector<1x1x4x1xf32>,
    %c0_25 = arith.constant 0 : index
    %c0_26 = arith.constant 0 : index
    %c0_27 = arith.constant 0 : index
    %c0_28 = arith.constant 0 : index
    %32 = vector.load %arg7[%c0_25, %c0_26, %c0_27, %c0_28] : memref<1x1x8x1xf32, #tpu.memory_space<vmem>>, vector<1x1x4x1xf32>
    %33 = vector.shape_cast %32 : vector<1x1x4x1xf32> to vector<4x1xf32>
    %34 = vector.shape_cast %21 : vector<4x1xf32> to vector<1x1x4x1xf32>
    tpu.vector_store %arg7[%c0_25, %c0_26, %c0_27, %c0_28], %34 {strides = array<i32>} : memref<1x1x8x1xf32, #tpu.memory_space<vmem>>, vector<1x1x4x1xf32>,
    %c0_29 = arith.constant 0 : index
    %c0_30 = arith.constant 0 : index
    %c4_31 = arith.constant 4 : index
    %c0_32 = arith.constant 0 : index
    %35 = vector.load %arg7[%c0_29, %c0_30, %c4_31, %c0_32] : memref<1x1x8x1xf32, #tpu.memory_space<vmem>>, vector<1x1x4x1xf32>
    %36 = vector.shape_cast %35 : vector<1x1x4x1xf32> to vector<4x1xf32>
    %37 = vector.shape_cast %25 : vector<4x1xf32> to vector<1x1x4x1xf32>
    tpu.vector_store %arg7[%c0_29, %c0_30, %c4_31, %c0_32], %37 {strides = array<i32>} : memref<1x1x8x1xf32, #tpu.memory_space<vmem>>, vector<1x1x4x1xf32>,
    return
  }
  func.func @transform_0(%arg0: i32, %arg1: i32) -> (i32, i32, i32) {
    %c0_i32 = arith.constant 0 : i32
    %c0_i32_0 = arith.constant 0 : i32
    return %arg0, %c0_i32, %arg1 : i32, i32, i32
  }
  func.func @transform_1(%arg0: i32, %arg1: i32) -> (i32, i32, i32) {
    %c0_i32 = arith.constant 0 : i32
    %c0_i32_0 = arith.constant 0 : i32
    return %arg0, %c0_i32, %arg1 : i32, i32, i32
  }
  func.func @transform_2(%arg0: i32, %arg1: i32) -> (i32, i32) {
    %c0_i32 = arith.constant 0 : i32
    %c0_i32_0 = arith.constant 0 : i32
    %c0_i32_1 = arith.constant 0 : i32
    return %c0_i32, %c0_i32_0 : i32, i32
  }
  func.func @transform_3(%arg0: i32, %arg1: i32) -> (i32, i32) {
    %c0_i32 = arith.constant 0 : i32
    %c0_i32_0 = arith.constant 0 : i32
    %c0_i32_1 = arith.constant 0 : i32
    return %c0_i32, %c0_i32_0 : i32, i32
  }
  func.func @transform_4(%arg0: i32, %arg1: i32) -> (i32, i32, i32, i32) {
    %c0_i32 = arith.constant 0 : i32
    %c0_i32_0 = arith.constant 0 : i32
    %c0_i32_1 = arith.constant 0 : i32
    return %arg0, %arg1, %c0_i32, %c0_i32_0 : i32, i32, i32, i32
  }
  func.func @transform_5(%arg0: i32, %arg1: i32) -> (i32, i32, i32, i32) {
    %c0_i32 = arith.constant 0 : i32
    %c0_i32_0 = arith.constant 0 : i32
    %c0_i32_1 = arith.constant 0 : i32
    return %arg0, %arg1, %c0_i32, %c0_i32_0 : i32, i32, i32, i32
  }
}

module attributes {stable_mosaic.version = 11 : i64} {
  func.func @_norm_kernel(%arg0: i32, %arg1: i32, %arg2: memref<1x4x64xbf16, #tpu.memory_space<vmem>>, %arg3: memref<1x4x64xbf16, #tpu.memory_space<vmem>>, %arg4: memref<4x4xbf16, #tpu.memory_space<vmem>>, %arg5: memref<4x4xbf16, #tpu.memory_space<vmem>>, %arg6: memref<8x1xf32, #tpu.memory_space<vmem>>, %arg7: memref<8x1xf32, #tpu.memory_space<vmem>>, %arg8: memref<1x8x64xf32, #tpu.memory_space<vmem>>) attributes {dimension_semantics = [#tpu.dimension_semantics<parallel>, #tpu.dimension_semantics<parallel>], iteration_bounds = array<i64: 2, 1>, scalar_prefetch = 0 : i64, scratch_operands = 0 : i64, tpu.core_type = #tpu.core_type<tc>, window_params = [{transform_indices = @transform_0, window_bounds = array<i64: 1, 4, 64>}, {transform_indices = @transform_1, window_bounds = array<i64: 1, 4, 64>}, {pipeline_mode = #tpu.pipeline_mode<synchronous>, transform_indices = @transform_2, window_bounds = array<i64: 4, 4>}, {pipeline_mode = #tpu.pipeline_mode<synchronous>, transform_indices = @transform_3, window_bounds = array<i64: 4, 4>}, {pipeline_mode = #tpu.pipeline_mode<synchronous>, transform_indices = @transform_4, window_bounds = array<i64: 8, 1>}, {pipeline_mode = #tpu.pipeline_mode<synchronous>, transform_indices = @transform_5, window_bounds = array<i64: 8, 1>}, {transform_indices = @transform_6, window_bounds = array<i64: 1, 8, 64>}]} {
    %c0 = arith.constant 0 : index
    %c0_0 = arith.constant 0 : index
    %0 = vector.load %arg4[%c0, %c0_0] : memref<4x4xbf16, #tpu.memory_space<vmem>>, vector<4x4xbf16>
    %c0_1 = arith.constant 0 : index
    %c0_2 = arith.constant 0 : index
    %1 = vector.load %arg5[%c0_1, %c0_2] : memref<4x4xbf16, #tpu.memory_space<vmem>>, vector<4x4xbf16>
    %c0_3 = arith.constant 0 : index
    %c0_4 = arith.constant 0 : index
    %2 = vector.load %arg6[%c0_3, %c0_4] : memref<8x1xf32, #tpu.memory_space<vmem>>, vector<4x1xf32>
    %c4 = arith.constant 4 : index
    %c0_5 = arith.constant 0 : index
    %3 = vector.load %arg6[%c4, %c0_5] : memref<8x1xf32, #tpu.memory_space<vmem>>, vector<4x1xf32>
    %c0_6 = arith.constant 0 : index
    %c0_7 = arith.constant 0 : index
    %4 = vector.load %arg7[%c0_6, %c0_7] : memref<8x1xf32, #tpu.memory_space<vmem>>, vector<4x1xf32>
    %c4_8 = arith.constant 4 : index
    %c0_9 = arith.constant 0 : index
    %5 = vector.load %arg7[%c4_8, %c0_9] : memref<8x1xf32, #tpu.memory_space<vmem>>, vector<4x1xf32>
    %c0_10 = arith.constant 0 : index
    %c0_11 = arith.constant 0 : index
    %c0_12 = arith.constant 0 : index
    %6 = vector.load %arg2[%c0_10, %c0_11, %c0_12] : memref<1x4x64xbf16, #tpu.memory_space<vmem>>, vector<1x4x64xbf16>
    %7 = vector.shape_cast %6 : vector<1x4x64xbf16> to vector<4x64xbf16>
    %cst = arith.constant dense<0.000000e+00> : vector<4x64xf32>
    %8 = tpu.matmul %0, %7, %cst {dimension_numbers = #tpu.dot_dimension_numbers<[1], [0], [0], [1], [0, 0, 1, 1], [], []>} : vector<4x4xbf16>, vector<4x64xbf16>, vector<4x64xf32> -> vector<4x64xf32>
    %c0_13 = arith.constant 0 : index
    %c0_14 = arith.constant 0 : index
    %c0_15 = arith.constant 0 : index
    %9 = vector.load %arg3[%c0_13, %c0_14, %c0_15] : memref<1x4x64xbf16, #tpu.memory_space<vmem>>, vector<1x4x64xbf16>
    %10 = vector.shape_cast %9 : vector<1x4x64xbf16> to vector<4x64xbf16>
    %cst_16 = arith.constant dense<0.000000e+00> : vector<4x64xf32>
    %11 = tpu.matmul %1, %10, %cst_16 {dimension_numbers = #tpu.dot_dimension_numbers<[1], [0], [0], [1], [0, 0, 1, 1], [], []>} : vector<4x4xbf16>, vector<4x64xbf16>, vector<4x64xf32> -> vector<4x64xf32>
    %12 = vector.broadcast %2 : vector<4x1xf32> to vector<4x64xf32>
    %13 = arith.mulf %8, %12 : vector<4x64xf32>
    %14 = vector.broadcast %4 : vector<4x1xf32> to vector<4x64xf32>
    %15 = arith.addf %13, %14 : vector<4x64xf32>
    %c0_17 = arith.constant 0 : index
    %c0_18 = arith.constant 0 : index
    %c0_19 = arith.constant 0 : index
    %16 = vector.load %arg8[%c0_17, %c0_18, %c0_19] : memref<1x8x64xf32, #tpu.memory_space<vmem>>, vector<1x4x64xf32>
    %17 = vector.shape_cast %16 : vector<1x4x64xf32> to vector<4x64xf32>
    %18 = vector.shape_cast %15 : vector<4x64xf32> to vector<1x4x64xf32>
    tpu.vector_store %arg8[%c0_17, %c0_18, %c0_19], %18 {strides = array<i32>} : memref<1x8x64xf32, #tpu.memory_space<vmem>>, vector<1x4x64xf32>,
    %19 = vector.broadcast %3 : vector<4x1xf32> to vector<4x64xf32>
    %20 = arith.mulf %11, %19 : vector<4x64xf32>
    %21 = vector.broadcast %5 : vector<4x1xf32> to vector<4x64xf32>
    %22 = arith.addf %20, %21 : vector<4x64xf32>
    %c0_20 = arith.constant 0 : index
    %c4_21 = arith.constant 4 : index
    %c0_22 = arith.constant 0 : index
    %23 = vector.load %arg8[%c0_20, %c4_21, %c0_22] : memref<1x8x64xf32, #tpu.memory_space<vmem>>, vector<1x4x64xf32>
    %24 = vector.shape_cast %23 : vector<1x4x64xf32> to vector<4x64xf32>
    %25 = vector.shape_cast %22 : vector<4x64xf32> to vector<1x4x64xf32>
    tpu.vector_store %arg8[%c0_20, %c4_21, %c0_22], %25 {strides = array<i32>} : memref<1x8x64xf32, #tpu.memory_space<vmem>>, vector<1x4x64xf32>,
    return
  }
  func.func @transform_0(%arg0: i32, %arg1: i32) -> (i32, i32, i32) {
    %c0_i32 = arith.constant 0 : i32
    %c0_i32_0 = arith.constant 0 : i32
    return %arg0, %c0_i32, %arg1 : i32, i32, i32
  }
  func.func @transform_1(%arg0: i32, %arg1: i32) -> (i32, i32, i32) {
    %c0_i32 = arith.constant 0 : i32
    %c0_i32_0 = arith.constant 0 : i32
    return %arg0, %c0_i32, %arg1 : i32, i32, i32
  }
  func.func @transform_2(%arg0: i32, %arg1: i32) -> (i32, i32) {
    %c0_i32 = arith.constant 0 : i32
    %c0_i32_0 = arith.constant 0 : i32
    %c0_i32_1 = arith.constant 0 : i32
    return %c0_i32, %c0_i32_0 : i32, i32
  }
  func.func @transform_3(%arg0: i32, %arg1: i32) -> (i32, i32) {
    %c0_i32 = arith.constant 0 : i32
    %c0_i32_0 = arith.constant 0 : i32
    %c0_i32_1 = arith.constant 0 : i32
    return %c0_i32, %c0_i32_0 : i32, i32
  }
  func.func @transform_4(%arg0: i32, %arg1: i32) -> (i32, i32) {
    %c0_i32 = arith.constant 0 : i32
    %c0_i32_0 = arith.constant 0 : i32
    %c0_i32_1 = arith.constant 0 : i32
    return %c0_i32, %c0_i32_0 : i32, i32
  }
  func.func @transform_5(%arg0: i32, %arg1: i32) -> (i32, i32) {
    %c0_i32 = arith.constant 0 : i32
    %c0_i32_0 = arith.constant 0 : i32
    %c0_i32_1 = arith.constant 0 : i32
    return %c0_i32, %c0_i32_0 : i32, i32
  }
  func.func @transform_6(%arg0: i32, %arg1: i32) -> (i32, i32, i32) {
    %c0_i32 = arith.constant 0 : i32
    %c0_i32_0 = arith.constant 0 : i32
    return %arg0, %c0_i32, %arg1 : i32, i32, i32
  }
}

</mosaic_0001>

<llo_original>
// kernel: factorized_forward.2
$region0: #{factorized_forward.2}
  #allocation0 [shape = 'u32[]', space=smem, size = 0x4, offset = 0x4, fixed_abs, tag = 'smem constant byte address 0x4 - core index']
  #allocation1 [shape = 'u32[72,128]{1,0:T(1,128)}', space=vmem, size = 0x9000, scoped, tag = 'internal scratch']
  %s0 = inlined_call_operand.vmem [shape: bf16[2,4,64], index: 0, kind: input, shape index: {}]
  %s1 = inlined_call_operand.vmem [shape: bf16[2,4,64], index: 1, kind: input, shape index: {}]
  %s2 = inlined_call_operand.vmem [shape: bf16[4,4], index: 2, kind: input, shape index: {}]
  %s3 = inlined_call_operand.vmem [shape: bf16[4,4], index: 3, kind: input, shape index: {}]
  %s4 = inlined_call_operand.vmem [shape: f32[2,1,8,1], index: 4, kind: output, shape index: {0}]
  %s5 = inlined_call_operand.vmem [shape: f32[2,1,8,1], index: 5, kind: output, shape index: {1}]
  %6 = xla_tuple %s4, %s5
  %s7 = sld [smem:[#allocation0]]
  $region57: #{factorized_forward.2} parent=0
    _
  %s9 = ssub.s32 1, %s7
  %s10 = scalar_select 0, %s9, %s7
  loop: start=0, step=1, limit=4
  $region2: #{factorized_forward.2} parent=0 // loop_pre_header
    _
  $region3: #{factorized_forward.2} parent=0 // loop_header
    %s12 = sphi 0, %s16
    %p13 = scmp.ge.s32.totalorder %s12, 4
    %s19 = sphi 0, %s31
    %s20 = sphi 0, %s27
    %s21 = sphi 0, %s19
    %s22 = sphi 0, %s20
    %s23 = sphi 0, %s21
    %s24 = sphi 0, %s22
    %s36 = sphi 0, %s38
    %s39 = sphi 0, %s36
    %s40 = sphi 0, %s39
    %s56 = sphi 0, %s40
    %s64 = sphi 0, %s66
    %s67 = sphi 0, %s64
    %s68 = sphi 0, %s67
    %s84 = sphi 0, %s68
    %s88 = sphi 0, %s88
    %s90 = sphi 0, %s88
    %s91 = sphi 0, %s90
    %s105 = sphi 0, %s91
    %s109 = sphi 0, %s109
    %s111 = sphi 0, %s109
    %s112 = sphi 0, %s111
    %s126 = sphi 0, %s112
    %s134 = sphi 0, %s136
    %s137 = sphi 0, %s134
    %s138 = sphi 0, %s137
    %s154 = sphi 0, %s138
    %s162 = sphi 0, %s164
    %s165 = sphi 0, %s162
    %s166 = sphi 0, %s165
    %s182 = sphi 0, %s166
  $region4: #{factorized_forward.2} parent=0 // loop_header_branch
    %15 = sbr.rel (%p13) target = $region8
  $region5: #{factorized_forward.2} parent=0 // loop_body
    %s17 = ssub.s32 %s12, 1
    %s18 = ssub.s32 %s12, 2
    %s25 = sadd.s32 1, %s20
    %p26 = scmp.ge.s32.totalorder %s25, 1
    %s27 = scalar_select %p26, 0, %s25
    %s28 = sadd.s32 1, %s19
    %s29 = scalar_select %p26, %s28, %s19
    %p30 = scmp.ge.s32.totalorder %s29, 2
    %s31 = scalar_select %p30, 0, %s29
    %s32 = ssub.s32 %s19, %s31
    %s33 = ssub.s32 %s20, %s27
    %s34 = sor.u32 %s32, %s33
    %p35 = scmp.eq.s32.totalorder %s34, 0
    %s37 = sadd.s32 %s36, 1
    %s38 = scalar_select %p35, %s36, %s37
    %p41 = pneg %p35
    %p42 = scmp.eq.s32.totalorder %s12, 1
    %p43 = por %p41, %p42
    %p44 = scmp.ne.s32.totalorder %s36, %s39
    %p45 = scmp.eq.s32.totalorder %s12, 0
    %p46 = por %p44, %p45
    %p47 = scmp.ne.s32.totalorder %s36, %s39
    %p48 = scmp.eq.s32.totalorder %s17, 1
    %p49 = por %p47, %p48
    %p50 = scmp.ne.s32.totalorder %s39, %s40
    %p51 = scmp.eq.s32.totalorder %s17, 0
    %p52 = por %p50, %p51
    %p53 = scmp.ne.s32.totalorder %s39, %s40
    %p54 = scmp.eq.s32.totalorder %s18, 1
    %p55 = por %p53, %p54
    %p57 = scmp.ne.s32.totalorder %s40, %s56
    %p58 = scmp.eq.s32.totalorder %s18, 0
    %p59 = por %p57, %p58
    %s60 = ssub.s32 %s19, %s31
    %s61 = ssub.s32 %s20, %s27
    %s62 = sor.u32 %s60, %s61
    %p63 = scmp.eq.s32.totalorder %s62, 0
    %s65 = sadd.s32 %s64, 1
    %s66 = scalar_select %p63, %s64, %s65
    %p69 = pneg %p63
    %p70 = scmp.eq.s32.totalorder %s12, 1
    %p71 = por %p69, %p70
    %p72 = scmp.ne.s32.totalorder %s64, %s67
    %p73 = scmp.eq.s32.totalorder %s12, 0
    %p74 = por %p72, %p73
    %p75 = scmp.ne.s32.totalorder %s64, %s67
    %p76 = scmp.eq.s32.totalorder %s17, 1
    %p77 = por %p75, %p76
    %p78 = scmp.ne.s32.totalorder %s67, %s68
    %p79 = scmp.eq.s32.totalorder %s17, 0
    %p80 = por %p78, %p79
    %p81 = scmp.ne.s32.totalorder %s67, %s68
    %p82 = scmp.eq.s32.totalorder %s18, 1
    %p83 = por %p81, %p82
    %p85 = scmp.ne.s32.totalorder %s68, %s84
    %p86 = scmp.eq.s32.totalorder %s18, 0
    %p87 = por %p85, %p86
    %s89 = sadd.s32 %s88, 1
    %p92 = scmp.eq.s32.totalorder %s12, 1
    %p93 = scmp.ne.s32.totalorder %s88, %s90
    %p94 = scmp.eq.s32.totalorder %s12, 0
    %p95 = por %p93, %p94
    %p96 = scmp.ne.s32.totalorder %s88, %s90
    %p97 = scmp.eq.s32.totalorder %s17, 1
    %p98 = por %p96, %p97
    %p99 = scmp.ne.s32.totalorder %s90, %s91
    %p100 = scmp.eq.s32.totalorder %s17, 0
    %p101 = por %p99, %p100
    %p102 = scmp.ne.s32.totalorder %s90, %s91
    %p103 = scmp.eq.s32.totalorder %s18, 1
    %p104 = por %p102, %p103
    %p106 = scmp.ne.s32.totalorder %s91, %s105
    %p107 = scmp.eq.s32.totalorder %s18, 0
    %p108 = por %p106, %p107
    %s110 = sadd.s32 %s109, 1
    %p113 = scmp.eq.s32.totalorder %s12, 1
    %p114 = scmp.ne.s32.totalorder %s109, %s111
    %p115 = scmp.eq.s32.totalorder %s12, 0
    %p116 = por %p114, %p115
    %p117 = scmp.ne.s32.totalorder %s109, %s111
    %p118 = scmp.eq.s32.totalorder %s17, 1
    %p119 = por %p117, %p118
    %p120 = scmp.ne.s32.totalorder %s111, %s112
    %p121 = scmp.eq.s32.totalorder %s17, 0
    %p122 = por %p120, %p121
    %p123 = scmp.ne.s32.totalorder %s111, %s112
    %p124 = scmp.eq.s32.totalorder %s18, 1
    %p125 = por %p123, %p124
    %p127 = scmp.ne.s32.totalorder %s112, %s126
    %p128 = scmp.eq.s32.totalorder %s18, 0
    %p129 = por %p127, %p128
    %s130 = ssub.s32 %s19, %s31
    %s131 = ssub.s32 %s20, %s27
    %s132 = sor.u32 %s130, %s131
    %p133 = scmp.eq.s32.totalorder %s132, 0
    %s135 = sadd.s32 %s134, 1
    %s136 = scalar_select %p133, %s134, %s135
    %p139 = pneg %p133
    %p140 = scmp.eq.s32.totalorder %s12, 1
    %p141 = por %p139, %p140
    %p142 = scmp.ne.s32.totalorder %s134, %s137
    %p143 = scmp.eq.s32.totalorder %s12, 0
    %p144 = por %p142, %p143
    %p145 = scmp.ne.s32.totalorder %s134, %s137
    %p146 = scmp.eq.s32.totalorder %s17, 1
    %p147 = por %p145, %p146
    %p148 = scmp.ne.s32.totalorder %s137, %s138
    %p149 = scmp.eq.s32.totalorder %s17, 0
    %p150 = por %p148, %p149
    %p151 = scmp.ne.s32.totalorder %s137, %s138
    %p152 = scmp.eq.s32.totalorder %s18, 1
    %p153 = por %p151, %p152
    %p155 = scmp.ne.s32.totalorder %s138, %s154
    %p156 = scmp.eq.s32.totalorder %s18, 0
    %p157 = por %p155, %p156
    %s158 = ssub.s32 %s19, %s31
    %s159 = ssub.s32 %s20, %s27
    %s160 = sor.u32 %s158, %s159
    %p161 = scmp.eq.s32.totalorder %s160, 0
    %s163 = sadd.s32 %s162, 1
    %s164 = scalar_select %p161, %s162, %s163
    %p167 = pneg %p161
    %p168 = scmp.eq.s32.totalorder %s12, 1
    %p169 = por %p167, %p168
    %p170 = scmp.ne.s32.totalorder %s162, %s165
    %p171 = scmp.eq.s32.totalorder %s12, 0
    %p172 = por %p170, %p171
    %p173 = scmp.ne.s32.totalorder %s162, %s165
    %p174 = scmp.eq.s32.totalorder %s17, 1
    %p175 = por %p173, %p174
    %p176 = scmp.ne.s32.totalorder %s165, %s166
    %p177 = scmp.eq.s32.totalorder %s17, 0
    %p178 = por %p176, %p177
    %p179 = scmp.ne.s32.totalorder %s165, %s166
    %p180 = scmp.eq.s32.totalorder %s18, 1
    %p181 = por %p179, %p180
    %p183 = scmp.ne.s32.totalorder %s166, %s182
    %p184 = scmp.eq.s32.totalorder %s18, 0
    %p185 = por %p183, %p184
    %p186 = scmp.le.s32.totalorder 1, %s12
    %p187 = scmp.lt.s32.totalorder %s12, 3
    %p188 = pnand %p186, %p187
    %p189 = pneg %p188
    // Predicated region
    $region9: #{factorized_forward.2} parent=5 // pred_check
      _
    $region10: #{factorized_forward.2} parent=5 // pred_check_branch
      %191 = sbr.rel (%p188) target = $region12
    $region11: #{factorized_forward.2} parent=5 // pred_region
      %s192 = ssub.s32 %s12, 1
      // Predicated region
      $region13: #{factorized_forward.2} parent=11 // pred_check
        %p193 = pneg %p101
      $region14: #{factorized_forward.2} parent=11 // pred_check_branch
        %195 = sbr.rel (%p193) target = $region16
      $region15: #{factorized_forward.2} parent=11 // pred_region
        _
      $region16: #{factorized_forward.2} parent=11 // pred_fallthru
        _
      // Predicated region
      $region17: #{factorized_forward.2} parent=11 // pred_check
        %p196 = pneg %p122
      $region18: #{factorized_forward.2} parent=11 // pred_check_branch
        %198 = sbr.rel (%p196) target = $region20
      $region19: #{factorized_forward.2} parent=11 // pred_region
        _
      $region20: #{factorized_forward.2} parent=11 // pred_fallthru
        _
    $region12: #{factorized_forward.2} parent=5 // pred_fallthru
      _
    %p199 = scmp.lt.s32.totalorder %s12, 2
    // Predicated region
    $region21: #{factorized_forward.2} parent=5 // pred_check
      %p200 = pneg %p199
    $region22: #{factorized_forward.2} parent=5 // pred_check_branch
      %202 = sbr.rel (%p200) target = $region24
    $region23: #{factorized_forward.2} parent=5 // pred_region
      // Predicated region
      $region25: #{factorized_forward.2} parent=23 // pred_check
        %p203 = pneg %p46
      $region26: #{factorized_forward.2} parent=23 // pred_check_branch
        %205 = sbr.rel (%p203) target = $region28
      $region27: #{factorized_forward.2} parent=23 // pred_region
        %p206 = scmp.lt.s32.totalorder %s19, 1
        %s207 = scalar_select %p206, %s19, 1
        %p208 = scmp.lt.s32.totalorder %s20, 0
        %s209 = scalar_select %p208, %s20, 0
        %s210 = sadd.s32 %s209, %s207
        %s211 = smul.addr %s210, 2
        %s212 = scalar_lea.vmem %s0, %s211
      $region28: #{factorized_forward.2} parent=23 // pred_fallthru
        _
      // Predicated region
      $region29: #{factorized_forward.2} parent=23 // pred_check
        %p213 = pneg %p74
      $region30: #{factorized_forward.2} parent=23 // pred_check_branch
        %215 = sbr.rel (%p213) target = $region32
      $region31: #{factorized_forward.2} parent=23 // pred_region
        %p216 = scmp.lt.s32.totalorder %s19, 1
        %s217 = scalar_select %p216, %s19, 1
        %p218 = scmp.lt.s32.totalorder %s20, 0
        %s219 = scalar_select %p218, %s20, 0
        %s220 = sadd.s32 %s219, %s217
        %s221 = smul.addr %s220, 2
        %s222 = scalar_lea.vmem %s1, %s221
      $region32: #{factorized_forward.2} parent=23 // pred_fallthru
        _
    $region24: #{factorized_forward.2} parent=5 // pred_fallthru
      _
    %p223 = scmp.le.s32.totalorder 1, %s12
    %p224 = scmp.lt.s32.totalorder %s12, 3
    %p225 = pnand %p223, %p224
    %p226 = pneg %p225
    // Predicated region
    $region33: #{factorized_forward.2} parent=5 // pred_check
      _
    $region34: #{factorized_forward.2} parent=5 // pred_check_branch
      %228 = sbr.rel (%p225) target = $region36
    $region35: #{factorized_forward.2} parent=5 // pred_region
      %s229 = ssub.s32 %s12, 1
      %p230 = scmp.lt.s32.totalorder %s21, 1
      %s231 = scalar_select %p230, %s21, 1
      %p232 = scmp.lt.s32.totalorder %s22, 0
      %s233 = scalar_select %p232, %s22, 0
      %s234 = sadd.s32 %s233, %s231
      %s235 = smul.addr %s234, 2
      %s236 = scalar_lea.vmem %s0, %s235
      %p237 = pneg %p52
      %p238 = pneg %p49
      %p239 = scmp.lt.s32.totalorder %s21, 1
      %s240 = scalar_select %p239, %s21, 1
      %p241 = scmp.lt.s32.totalorder %s22, 0
      %s242 = scalar_select %p241, %s22, 0
      %s243 = sadd.s32 %s242, %s240
      %s244 = smul.addr %s243, 2
      %s245 = scalar_lea.vmem %s1, %s244
      %p246 = pneg %p80
      %p247 = pneg %p77
      %p248 = pneg %p101
      %p249 = pneg %p98
      %p250 = pneg %p122
      %p251 = pneg %p119
      %p252 = pneg %p150
      %p253 = pneg %p147
      %p254 = scmp.lt.s32.totalorder %s21, 1
      %s255 = scalar_select %p254, %s21, 1
      %p256 = scmp.lt.s32.totalorder %s22, 0
      %s257 = scalar_select %p256, %s22, 0
      %s258 = sadd.s32 %s257, %s255
      %s259 = smul.addr %s258, 8
      %s260 = scalar_lea.vmem %s4, %s259
      %p261 = pneg %p178
      %p262 = pneg %p175
      %p263 = scmp.lt.s32.totalorder %s21, 1
      %s264 = scalar_select %p263, %s21, 1
      %p265 = scmp.lt.s32.totalorder %s22, 0
      %s266 = scalar_select %p265, %s22, 0
      %s267 = sadd.s32 %s266, %s264
      %s268 = smul.addr %s267, 8
      %s269 = scalar_lea.vmem %s5, %s268
      %p270 = scmp.lt.s32.totalorder %s21, 1
      %s271 = scalar_select %p270, %s21, 1
      %p272 = scmp.lt.s32.totalorder %s22, 0
      %s273 = scalar_select %p272, %s22, 0
      %s274 = sadd.s32 %s273, %s271
      %s275 = smul.addr %s274, 2
      %s276 = scalar_lea.vmem %s0, %s275
      %p277 = scmp.lt.s32.totalorder %s21, 1
      %s278 = scalar_select %p277, %s21, 1
      %p279 = scmp.lt.s32.totalorder %s22, 0
      %s280 = scalar_select %p279, %s22, 0
      %s281 = sadd.s32 %s280, %s278
      %s282 = smul.addr %s281, 2
      %s283 = scalar_lea.vmem %s1, %s282
      %p284 = scmp.lt.s32.totalorder %s21, 1
      %s285 = scalar_select %p284, %s21, 1
      %p286 = scmp.lt.s32.totalorder %s22, 0
      %s287 = scalar_select %p286, %s22, 0
      %s288 = sadd.s32 %s287, %s285
      %s289 = smul.addr %s288, 8
      %s290 = scalar_lea.vmem %s4, %s289
      %p291 = scmp.lt.s32.totalorder %s21, 1
      %s292 = scalar_select %p291, %s21, 1
      %p293 = scmp.lt.s32.totalorder %s22, 0
      %s294 = scalar_select %p293, %s22, 0
      %s295 = sadd.s32 %s294, %s292
      %s296 = smul.addr %s295, 8
      %s297 = scalar_lea.vmem %s5, %s296
      %v299 = vld [vmem:[%s2] sm:$0x3]
      %v300 = vld [vmem:[%s3] sm:$0x3]
      %v301 = vld [vmem:[%s276] sm:$0x3]
      %vm302 = vcmask 31744
      %v304 = vsel %vm302, %v299, 0
      %vm306 = vcmask 1041408
      %v308 = vsel %vm306, %v301, 0
      %310 = vmatpush.bf16.msra.mxu0 0
      %311 = vmatpush.bf16.msra.mxu0 0
      %312 = vmatpush.bf16.msra.mxu0 0
      %313 = vmatpush.bf16.msra.mxu0 0
      %314 = vmatpush.bf16.msra.mxu0 0
      %315 = vmatpush.bf16.msra.mxu0 0
      %316 = vmatpush.bf16.msra.mxu0 0
      %317 = vmatpush.bf16.msra.mxu0 %v308
      %318 = vmatmul.bf16.gmra.mxu0 %v304
      %v319 = vpop.f32.mrf.mxu0
      %v320 = vadd.f32 0.0, %v319
      %v321 = vpop.f32.mrf.mxu0
      %322 = vdwg.mxu0
      %v323 = vld [vmem:[%s283] sm:$0x3]
      %v325 = vsel %vm302, %v300, 0
      %v328 = vsel %vm306, %v323, 0
      %330 = vmatpush.bf16.msra.mxu0 0
      %331 = vmatpush.bf16.msra.mxu0 0
      %332 = vmatpush.bf16.msra.mxu0 0
      %333 = vmatpush.bf16.msra.mxu0 0
      %334 = vmatpush.bf16.msra.mxu0 0
      %335 = vmatpush.bf16.msra.mxu0 0
      %336 = vmatpush.bf16.msra.mxu0 0
      %337 = vmatpush.bf16.msra.mxu0 %v328
      %338 = vmatmul.bf16.gmra.mxu0 %v325
      %v339 = vpop.f32.mrf.mxu0
      %v340 = vadd.f32 0.0, %v339
      %v341 = vpop.f32.mrf.mxu0
      %342 = vdwg.mxu0
      %vm343 = vcmask 519168
      %v344 = vsel %vm343, %v320, 0.0
      %345 = vadd.xlane.f32.xlu0 %v344
      %v346 = vpop.xlane.xlu0 %345
      %v347 = vadd.f32 %v346, 0.0
      %v348 = vsel %vm343, %v340, 0.0
      %349 = vadd.xlane.f32.xlu0 %v348
      %v350 = vpop.xlane.xlu0 %349
      %v351 = vadd.f32 %v350, 0.0
      %v352 = vmul.f32 %v320, %v320
      %v353 = vsel %vm343, %v352, 0.0
      %354 = vadd.xlane.f32.xlu0 %v353
      %v355 = vpop.xlane.xlu0 %354
      %v356 = vadd.f32 %v355, 0.0
      %v357 = vmul.f32 %v340, %v340
      %v358 = vsel %vm343, %v357, 0.0
      %359 = vadd.xlane.f32.xlu0 %v358
      %v360 = vpop.xlane.xlu0 %359
      %v361 = vadd.f32 %v360, 0.0
      %vm362 = vcmask 3072
      %363 = vst.msk [vmem:[%s290] sm:$0xf] %vm362, %v347
      %364 = vst.msk [vmem:[%s290 + $0x4] sm:$0xf] %vm362, %v351
      %365 = vst.msk [vmem:[%s297] sm:$0xf] %vm362, %v356
      %366 = vst.msk [vmem:[%s297 + $0x4] sm:$0xf] %vm362, %v361
      %p367 = scmp.lt.s32.totalorder %s21, 1
      %s368 = scalar_select %p367, %s21, 1
      %p369 = scmp.lt.s32.totalorder %s22, 0
      %s370 = scalar_select %p369, %s22, 0
      %s371 = sadd.s32 %s370, %s368
      %s372 = smul.addr %s371, 8
      %s373 = scalar_lea.vmem %s4, %s372
      %p374 = scmp.lt.s32.totalorder %s21, 1
      %s375 = scalar_select %p374, %s21, 1
      %p376 = scmp.lt.s32.totalorder %s22, 0
      %s377 = scalar_select %p376, %s22, 0
      %s378 = sadd.s32 %s377, %s375
      %s379 = smul.addr %s378, 8
      %s380 = scalar_lea.vmem %s5, %s379
      // Predicated region
      $region37: #{factorized_forward.2} parent=35 // pred_check
        %p381 = pneg %p147
      $region38: #{factorized_forward.2} parent=35 // pred_check_branch
        %383 = sbr.rel (%p381) target = $region40
      $region39: #{factorized_forward.2} parent=35 // pred_region
        _
      $region40: #{factorized_forward.2} parent=35 // pred_fallthru
        _
      // Predicated region
      $region41: #{factorized_forward.2} parent=35 // pred_check
        %p384 = pneg %p175
      $region42: #{factorized_forward.2} parent=35 // pred_check_branch
        %386 = sbr.rel (%p384) target = $region44
      $region43: #{factorized_forward.2} parent=35 // pred_region
        _
      $region44: #{factorized_forward.2} parent=35 // pred_fallthru
        _
    $region36: #{factorized_forward.2} parent=5 // pred_fallthru
      _
    %p387 = scmp.le.s32.totalorder 2, %s12
    // Predicated region
    $region45: #{factorized_forward.2} parent=5 // pred_check
      %p388 = pneg %p387
    $region46: #{factorized_forward.2} parent=5 // pred_check_branch
      %390 = sbr.rel (%p388) target = $region48
    $region47: #{factorized_forward.2} parent=5 // pred_region
      %s391 = ssub.s32 %s12, 2
      // Predicated region
      $region49: #{factorized_forward.2} parent=47 // pred_check
        %p392 = pneg %p153
      $region50: #{factorized_forward.2} parent=47 // pred_check_branch
        %394 = sbr.rel (%p392) target = $region52
      $region51: #{factorized_forward.2} parent=47 // pred_region
        %p395 = scmp.lt.s32.totalorder %s23, 1
        %s396 = scalar_select %p395, %s23, 1
        %p397 = scmp.lt.s32.totalorder %s24, 0
        %s398 = scalar_select %p397, %s24, 0
        %s399 = sadd.s32 %s398, %s396
        %s400 = smul.addr %s399, 8
        %s401 = scalar_lea.vmem %s4, %s400
      $region52: #{factorized_forward.2} parent=47 // pred_fallthru
        _
      // Predicated region
      $region53: #{factorized_forward.2} parent=47 // pred_check
        %p402 = pneg %p181
      $region54: #{factorized_forward.2} parent=47 // pred_check_branch
        %404 = sbr.rel (%p402) target = $region56
      $region55: #{factorized_forward.2} parent=47 // pred_region
        %p405 = scmp.lt.s32.totalorder %s23, 1
        %s406 = scalar_select %p405, %s23, 1
        %p407 = scmp.lt.s32.totalorder %s24, 0
        %s408 = scalar_select %p407, %s24, 0
        %s409 = sadd.s32 %s408, %s406
        %s410 = smul.addr %s409, 8
        %s411 = scalar_lea.vmem %s5, %s410
      $region56: #{factorized_forward.2} parent=47 // pred_fallthru
        _
    $region48: #{factorized_forward.2} parent=5 // pred_fallthru
      _
  $region6: #{factorized_forward.2} parent=0 // loop_footer
    %s16 = sadd.s32 1, %s12
  $region7: #{factorized_forward.2} parent=0 // loop_footer_branch
    %11 = sbr.rel target = $region3
  $region8: #{factorized_forward.2} parent=0 // loop_exit
    _

// kernel: factorized_forward.3
$region0: #{factorized_forward.3}
  #allocation0 [shape = 'u32[]', space=smem, size = 0x4, offset = 0x4, fixed_abs, tag = 'smem constant byte address 0x4 - core index']
  #allocation1 [shape = 'u32[72,128]{1,0:T(1,128)}', space=vmem, size = 0x9000, scoped, tag = 'internal scratch']
  %s0 = inlined_call_operand.vmem [shape: bf16[2,4,64], index: 0, kind: input, shape index: {}]
  %s1 = inlined_call_operand.vmem [shape: bf16[2,4,64], index: 1, kind: input, shape index: {}]
  %s2 = inlined_call_operand.vmem [shape: bf16[4,4], index: 2, kind: input, shape index: {}]
  %s3 = inlined_call_operand.vmem [shape: bf16[4,4], index: 3, kind: input, shape index: {}]
  %s4 = inlined_call_operand.vmem [shape: f32[8,1], index: 4, kind: input, shape index: {}]
  %s5 = inlined_call_operand.vmem [shape: f32[8,1], index: 5, kind: input, shape index: {}]
  %s6 = inlined_call_operand.vmem [shape: f32[2,8,64], index: 6, kind: output, shape index: {}]
  %s7 = sld [smem:[#allocation0]]
  $region57: #{factorized_forward.3} parent=0
    _
  %s9 = ssub.s32 1, %s7
  %s10 = scalar_select 0, %s9, %s7
  loop: start=0, step=1, limit=4
  $region2: #{factorized_forward.3} parent=0 // loop_pre_header
    _
  $region3: #{factorized_forward.3} parent=0 // loop_header
    %s12 = sphi 0, %s16
    %p13 = scmp.ge.s32.totalorder %s12, 4
    %s19 = sphi 0, %s31
    %s20 = sphi 0, %s27
    %s21 = sphi 0, %s19
    %s22 = sphi 0, %s20
    %s23 = sphi 0, %s21
    %s24 = sphi 0, %s22
    %s36 = sphi 0, %s38
    %s39 = sphi 0, %s36
    %s40 = sphi 0, %s39
    %s56 = sphi 0, %s40
    %s64 = sphi 0, %s66
    %s67 = sphi 0, %s64
    %s68 = sphi 0, %s67
    %s84 = sphi 0, %s68
    %s88 = sphi 0, %s88
    %s90 = sphi 0, %s88
    %s91 = sphi 0, %s90
    %s105 = sphi 0, %s91
    %s109 = sphi 0, %s109
    %s111 = sphi 0, %s109
    %s112 = sphi 0, %s111
    %s126 = sphi 0, %s112
    %s130 = sphi 0, %s130
    %s132 = sphi 0, %s130
    %s133 = sphi 0, %s132
    %s147 = sphi 0, %s133
    %s151 = sphi 0, %s151
    %s153 = sphi 0, %s151
    %s154 = sphi 0, %s153
    %s168 = sphi 0, %s154
    %s176 = sphi 0, %s178
    %s179 = sphi 0, %s176
    %s180 = sphi 0, %s179
    %s196 = sphi 0, %s180
  $region4: #{factorized_forward.3} parent=0 // loop_header_branch
    %15 = sbr.rel (%p13) target = $region8
  $region5: #{factorized_forward.3} parent=0 // loop_body
    %s17 = ssub.s32 %s12, 1
    %s18 = ssub.s32 %s12, 2
    %s25 = sadd.s32 1, %s20
    %p26 = scmp.ge.s32.totalorder %s25, 1
    %s27 = scalar_select %p26, 0, %s25
    %s28 = sadd.s32 1, %s19
    %s29 = scalar_select %p26, %s28, %s19
    %p30 = scmp.ge.s32.totalorder %s29, 2
    %s31 = scalar_select %p30, 0, %s29
    %s32 = ssub.s32 %s19, %s31
    %s33 = ssub.s32 %s20, %s27
    %s34 = sor.u32 %s32, %s33
    %p35 = scmp.eq.s32.totalorder %s34, 0
    %s37 = sadd.s32 %s36, 1
    %s38 = scalar_select %p35, %s36, %s37
    %p41 = pneg %p35
    %p42 = scmp.eq.s32.totalorder %s12, 1
    %p43 = por %p41, %p42
    %p44 = scmp.ne.s32.totalorder %s36, %s39
    %p45 = scmp.eq.s32.totalorder %s12, 0
    %p46 = por %p44, %p45
    %p47 = scmp.ne.s32.totalorder %s36, %s39
    %p48 = scmp.eq.s32.totalorder %s17, 1
    %p49 = por %p47, %p48
    %p50 = scmp.ne.s32.totalorder %s39, %s40
    %p51 = scmp.eq.s32.totalorder %s17, 0
    %p52 = por %p50, %p51
    %p53 = scmp.ne.s32.totalorder %s39, %s40
    %p54 = scmp.eq.s32.totalorder %s18, 1
    %p55 = por %p53, %p54
    %p57 = scmp.ne.s32.totalorder %s40, %s56
    %p58 = scmp.eq.s32.totalorder %s18, 0
    %p59 = por %p57, %p58
    %s60 = ssub.s32 %s19, %s31
    %s61 = ssub.s32 %s20, %s27
    %s62 = sor.u32 %s60, %s61
    %p63 = scmp.eq.s32.totalorder %s62, 0
    %s65 = sadd.s32 %s64, 1
    %s66 = scalar_select %p63, %s64, %s65
    %p69 = pneg %p63
    %p70 = scmp.eq.s32.totalorder %s12, 1
    %p71 = por %p69, %p70
    %p72 = scmp.ne.s32.totalorder %s64, %s67
    %p73 = scmp.eq.s32.totalorder %s12, 0
    %p74 = por %p72, %p73
    %p75 = scmp.ne.s32.totalorder %s64, %s67
    %p76 = scmp.eq.s32.totalorder %s17, 1
    %p77 = por %p75, %p76
    %p78 = scmp.ne.s32.totalorder %s67, %s68
    %p79 = scmp.eq.s32.totalorder %s17, 0
    %p80 = por %p78, %p79
    %p81 = scmp.ne.s32.totalorder %s67, %s68
    %p82 = scmp.eq.s32.totalorder %s18, 1
    %p83 = por %p81, %p82
    %p85 = scmp.ne.s32.totalorder %s68, %s84
    %p86 = scmp.eq.s32.totalorder %s18, 0
    %p87 = por %p85, %p86
    %s89 = sadd.s32 %s88, 1
    %p92 = scmp.eq.s32.totalorder %s12, 1
    %p93 = scmp.ne.s32.totalorder %s88, %s90
    %p94 = scmp.eq.s32.totalorder %s12, 0
    %p95 = por %p93, %p94
    %p96 = scmp.ne.s32.totalorder %s88, %s90
    %p97 = scmp.eq.s32.totalorder %s17, 1
    %p98 = por %p96, %p97
    %p99 = scmp.ne.s32.totalorder %s90, %s91
    %p100 = scmp.eq.s32.totalorder %s17, 0
    %p101 = por %p99, %p100
    %p102 = scmp.ne.s32.totalorder %s90, %s91
    %p103 = scmp.eq.s32.totalorder %s18, 1
    %p104 = por %p102, %p103
    %p106 = scmp.ne.s32.totalorder %s91, %s105
    %p107 = scmp.eq.s32.totalorder %s18, 0
    %p108 = por %p106, %p107
    %s110 = sadd.s32 %s109, 1
    %p113 = scmp.eq.s32.totalorder %s12, 1
    %p114 = scmp.ne.s32.totalorder %s109, %s111
    %p115 = scmp.eq.s32.totalorder %s12, 0
    %p116 = por %p114, %p115
    %p117 = scmp.ne.s32.totalorder %s109, %s111
    %p118 = scmp.eq.s32.totalorder %s17, 1
    %p119 = por %p117, %p118
    %p120 = scmp.ne.s32.totalorder %s111, %s112
    %p121 = scmp.eq.s32.totalorder %s17, 0
    %p122 = por %p120, %p121
    %p123 = scmp.ne.s32.totalorder %s111, %s112
    %p124 = scmp.eq.s32.totalorder %s18, 1
    %p125 = por %p123, %p124
    %p127 = scmp.ne.s32.totalorder %s112, %s126
    %p128 = scmp.eq.s32.totalorder %s18, 0
    %p129 = por %p127, %p128
    %s131 = sadd.s32 %s130, 1
    %p134 = scmp.eq.s32.totalorder %s12, 1
    %p135 = scmp.ne.s32.totalorder %s130, %s132
    %p136 = scmp.eq.s32.totalorder %s12, 0
    %p137 = por %p135, %p136
    %p138 = scmp.ne.s32.totalorder %s130, %s132
    %p139 = scmp.eq.s32.totalorder %s17, 1
    %p140 = por %p138, %p139
    %p141 = scmp.ne.s32.totalorder %s132, %s133
    %p142 = scmp.eq.s32.totalorder %s17, 0
    %p143 = por %p141, %p142
    %p144 = scmp.ne.s32.totalorder %s132, %s133
    %p145 = scmp.eq.s32.totalorder %s18, 1
    %p146 = por %p144, %p145
    %p148 = scmp.ne.s32.totalorder %s133, %s147
    %p149 = scmp.eq.s32.totalorder %s18, 0
    %p150 = por %p148, %p149
    %s152 = sadd.s32 %s151, 1
    %p155 = scmp.eq.s32.totalorder %s12, 1
    %p156 = scmp.ne.s32.totalorder %s151, %s153
    %p157 = scmp.eq.s32.totalorder %s12, 0
    %p158 = por %p156, %p157
    %p159 = scmp.ne.s32.totalorder %s151, %s153
    %p160 = scmp.eq.s32.totalorder %s17, 1
    %p161 = por %p159, %p160
    %p162 = scmp.ne.s32.totalorder %s153, %s154
    %p163 = scmp.eq.s32.totalorder %s17, 0
    %p164 = por %p162, %p163
    %p165 = scmp.ne.s32.totalorder %s153, %s154
    %p166 = scmp.eq.s32.totalorder %s18, 1
    %p167 = por %p165, %p166
    %p169 = scmp.ne.s32.totalorder %s154, %s168
    %p170 = scmp.eq.s32.totalorder %s18, 0
    %p171 = por %p169, %p170
    %s172 = ssub.s32 %s19, %s31
    %s173 = ssub.s32 %s20, %s27
    %s174 = sor.u32 %s172, %s173
    %p175 = scmp.eq.s32.totalorder %s174, 0
    %s177 = sadd.s32 %s176, 1
    %s178 = scalar_select %p175, %s176, %s177
    %p181 = pneg %p175
    %p182 = scmp.eq.s32.totalorder %s12, 1
    %p183 = por %p181, %p182
    %p184 = scmp.ne.s32.totalorder %s176, %s179
    %p185 = scmp.eq.s32.totalorder %s12, 0
    %p186 = por %p184, %p185
    %p187 = scmp.ne.s32.totalorder %s176, %s179
    %p188 = scmp.eq.s32.totalorder %s17, 1
    %p189 = por %p187, %p188
    %p190 = scmp.ne.s32.totalorder %s179, %s180
    %p191 = scmp.eq.s32.totalorder %s17, 0
    %p192 = por %p190, %p191
    %p193 = scmp.ne.s32.totalorder %s179, %s180
    %p194 = scmp.eq.s32.totalorder %s18, 1
    %p195 = por %p193, %p194
    %p197 = scmp.ne.s32.totalorder %s180, %s196
    %p198 = scmp.eq.s32.totalorder %s18, 0
    %p199 = por %p197, %p198
    %p200 = scmp.le.s32.totalorder 1, %s12
    %p201 = scmp.lt.s32.totalorder %s12, 3
    %p202 = pnand %p200, %p201
    %p203 = pneg %p202
    // Predicated region
    $region9: #{factorized_forward.3} parent=5 // pred_check
      _
    $region10: #{factorized_forward.3} parent=5 // pred_check_branch
      %205 = sbr.rel (%p202) target = $region12
    $region11: #{factorized_forward.3} parent=5 // pred_region
      %s206 = ssub.s32 %s12, 1
      // Predicated region
      $region13: #{factorized_forward.3} parent=11 // pred_check
        %p207 = pneg %p101
      $region14: #{factorized_forward.3} parent=11 // pred_check_branch
        %209 = sbr.rel (%p207) target = $region16
      $region15: #{factorized_forward.3} parent=11 // pred_region
        _
      $region16: #{factorized_forward.3} parent=11 // pred_fallthru
        _
      // Predicated region
      $region17: #{factorized_forward.3} parent=11 // pred_check
        %p210 = pneg %p122
      $region18: #{factorized_forward.3} parent=11 // pred_check_branch
        %212 = sbr.rel (%p210) target = $region20
      $region19: #{factorized_forward.3} parent=11 // pred_region
        _
      $region20: #{factorized_forward.3} parent=11 // pred_fallthru
        _
      // Predicated region
      $region21: #{factorized_forward.3} parent=11 // pred_check
        %p213 = pneg %p143
      $region22: #{factorized_forward.3} parent=11 // pred_check_branch
        %215 = sbr.rel (%p213) target = $region24
      $region23: #{factorized_forward.3} parent=11 // pred_region
        _
      $region24: #{factorized_forward.3} parent=11 // pred_fallthru
        _
      // Predicated region
      $region25: #{factorized_forward.3} parent=11 // pred_check
        %p216 = pneg %p164
      $region26: #{factorized_forward.3} parent=11 // pred_check_branch
        %218 = sbr.rel (%p216) target = $region28
      $region27: #{factorized_forward.3} parent=11 // pred_region
        _
      $region28: #{factorized_forward.3} parent=11 // pred_fallthru
        _
    $region12: #{factorized_forward.3} parent=5 // pred_fallthru
      _
    %p219 = scmp.lt.s32.totalorder %s12, 2
    // Predicated region
    $region29: #{factorized_forward.3} parent=5 // pred_check
      %p220 = pneg %p219
    $region30: #{factorized_forward.3} parent=5 // pred_check_branch
      %222 = sbr.rel (%p220) target = $region32
    $region31: #{factorized_forward.3} parent=5 // pred_region
      // Predicated region
      $region33: #{factorized_forward.3} parent=31 // pred_check
        %p223 = pneg %p46
      $region34: #{factorized_forward.3} parent=31 // pred_check_branch
        %225 = sbr.rel (%p223) target = $region36
      $region35: #{factorized_forward.3} parent=31 // pred_region
        %p226 = scmp.lt.s32.totalorder %s19, 1
        %s227 = scalar_select %p226, %s19, 1
        %p228 = scmp.lt.s32.totalorder %s20, 0
        %s229 = scalar_select %p228, %s20, 0
        %s230 = sadd.s32 %s229, %s227
        %s231 = smul.addr %s230, 2
        %s232 = scalar_lea.vmem %s0, %s231
      $region36: #{factorized_forward.3} parent=31 // pred_fallthru
        _
      // Predicated region
      $region37: #{factorized_forward.3} parent=31 // pred_check
        %p233 = pneg %p74
      $region38: #{factorized_forward.3} parent=31 // pred_check_branch
        %235 = sbr.rel (%p233) target = $region40
      $region39: #{factorized_forward.3} parent=31 // pred_region
        %p236 = scmp.lt.s32.totalorder %s19, 1
        %s237 = scalar_select %p236, %s19, 1
        %p238 = scmp.lt.s32.totalorder %s20, 0
        %s239 = scalar_select %p238, %s20, 0
        %s240 = sadd.s32 %s239, %s237
        %s241 = smul.addr %s240, 2
        %s242 = scalar_lea.vmem %s1, %s241
      $region40: #{factorized_forward.3} parent=31 // pred_fallthru
        _
    $region32: #{factorized_forward.3} parent=5 // pred_fallthru
      _
    %p243 = scmp.le.s32.totalorder 1, %s12
    %p244 = scmp.lt.s32.totalorder %s12, 3
    %p245 = pnand %p243, %p244
    %p246 = pneg %p245
    // Predicated region
    $region41: #{factorized_forward.3} parent=5 // pred_check
      _
    $region42: #{factorized_forward.3} parent=5 // pred_check_branch
      %248 = sbr.rel (%p245) target = $region44
    $region43: #{factorized_forward.3} parent=5 // pred_region
      %s249 = ssub.s32 %s12, 1
      %p250 = scmp.lt.s32.totalorder %s21, 1
      %s251 = scalar_select %p250, %s21, 1
      %p252 = scmp.lt.s32.totalorder %s22, 0
      %s253 = scalar_select %p252, %s22, 0
      %s254 = sadd.s32 %s253, %s251
      %s255 = smul.addr %s254, 2
      %s256 = scalar_lea.vmem %s0, %s255
      %p257 = pneg %p52
      %p258 = pneg %p49
      %p259 = scmp.lt.s32.totalorder %s21, 1
      %s260 = scalar_select %p259, %s21, 1
      %p261 = scmp.lt.s32.totalorder %s22, 0
      %s262 = scalar_select %p261, %s22, 0
      %s263 = sadd.s32 %s262, %s260
      %s264 = smul.addr %s263, 2
      %s265 = scalar_lea.vmem %s1, %s264
      %p266 = pneg %p80
      %p267 = pneg %p77
      %p268 = pneg %p101
      %p269 = pneg %p98
      %p270 = pneg %p122
      %p271 = pneg %p119
      %p272 = pneg %p143
      %p273 = pneg %p140
      %p274 = pneg %p164
      %p275 = pneg %p161
      %p276 = pneg %p192
      %p277 = pneg %p189
      %p278 = scmp.lt.s32.totalorder %s21, 1
      %s279 = scalar_select %p278, %s21, 1
      %p280 = scmp.lt.s32.totalorder %s22, 0
      %s281 = scalar_select %p280, %s22, 0
      %s282 = sadd.s32 %s281, %s279
      %s283 = smul.addr %s282, 8
      %s284 = scalar_lea.vmem %s6, %s283
      %p285 = scmp.lt.s32.totalorder %s21, 1
      %s286 = scalar_select %p285, %s21, 1
      %p287 = scmp.lt.s32.totalorder %s22, 0
      %s288 = scalar_select %p287, %s22, 0
      %s289 = sadd.s32 %s288, %s286
      %s290 = smul.addr %s289, 2
      %s291 = scalar_lea.vmem %s0, %s290
      %p292 = scmp.lt.s32.totalorder %s21, 1
      %s293 = scalar_select %p292, %s21, 1
      %p294 = scmp.lt.s32.totalorder %s22, 0
      %s295 = scalar_select %p294, %s22, 0
      %s296 = sadd.s32 %s295, %s293
      %s297 = smul.addr %s296, 2
      %s298 = scalar_lea.vmem %s1, %s297
      %p299 = scmp.lt.s32.totalorder %s21, 1
      %s300 = scalar_select %p299, %s21, 1
      %p301 = scmp.lt.s32.totalorder %s22, 0
      %s302 = scalar_select %p301, %s22, 0
      %s303 = sadd.s32 %s302, %s300
      %s304 = smul.addr %s303, 8
      %s305 = scalar_lea.vmem %s6, %s304
      %v307 = vld [vmem:[%s2] sm:$0x3]
      %v308 = vld [vmem:[%s3] sm:$0x3]
      %v309 = vld [vmem:[%s4] sm:$0xf]
      %v310 = vld [vmem:[%s4 + $0x4] sm:$0xf]
      %v311 = vld [vmem:[%s5] sm:$0xf]
      %v312 = vld [vmem:[%s5 + $0x4] sm:$0xf]
      %v313 = vld [vmem:[%s291] sm:$0x3]
      %vm314 = vcmask 31744
      %v316 = vsel %vm314, %v307, 0
      %vm318 = vcmask 1041408
      %v320 = vsel %vm318, %v313, 0
      %322 = vmatpush.bf16.msra.mxu0 0
      %323 = vmatpush.bf16.msra.mxu0 0
      %324 = vmatpush.bf16.msra.mxu0 0
      %325 = vmatpush.bf16.msra.mxu0 0
      %326 = vmatpush.bf16.msra.mxu0 0
      %327 = vmatpush.bf16.msra.mxu0 0
      %328 = vmatpush.bf16.msra.mxu0 0
      %329 = vmatpush.bf16.msra.mxu0 %v320
      %330 = vmatmul.bf16.gmra.mxu0 %v316
      %v331 = vpop.f32.mrf.mxu0
      %v332 = vadd.f32 0.0, %v331
      %v333 = vpop.f32.mrf.mxu0
      %334 = vdwg.mxu0
      %v335 = vld [vmem:[%s298] sm:$0x3]
      %v337 = vsel %vm314, %v308, 0
      %v340 = vsel %vm318, %v335, 0
      %342 = vmatpush.bf16.msra.mxu0 0
      %343 = vmatpush.bf16.msra.mxu0 0
      %344 = vmatpush.bf16.msra.mxu0 0
      %345 = vmatpush.bf16.msra.mxu0 0
      %346 = vmatpush.bf16.msra.mxu0 0
      %347 = vmatpush.bf16.msra.mxu0 0
      %348 = vmatpush.bf16.msra.mxu0 0
      %349 = vmatpush.bf16.msra.mxu0 %v340
      %350 = vmatmul.bf16.gmra.mxu0 %v337
      %v351 = vpop.f32.mrf.mxu0
      %v352 = vadd.f32 0.0, %v351
      %v353 = vpop.f32.mrf.mxu0
      %354 = vdwg.mxu0
      %356 = vset.pattern.permute.xlu0 0
      %357 = vperm.xlu0 %356, %v309
      %v358 = vpop.permute.xlu0 %357
      %v360 = vmul.f32 %v332, %v358
      %362 = vset.pattern.permute.xlu0 0
      %363 = vperm.xlu0 %362, %v311
      %v364 = vpop.permute.xlu0 %363
      %v366 = vadd.f32 %v360, %v364
      %vm367 = vcmask 519168
      %368 = vst.msk [vmem:[%s305] sm:$0xf] %vm367, %v366
      %370 = vset.pattern.permute.xlu0 0
      %371 = vperm.xlu0 %370, %v310
      %v372 = vpop.permute.xlu0 %371
      %v374 = vmul.f32 %v352, %v372
      %376 = vset.pattern.permute.xlu0 0
      %377 = vperm.xlu0 %376, %v312
      %v378 = vpop.permute.xlu0 %377
      %v380 = vadd.f32 %v374, %v378
      %381 = vst.msk [vmem:[%s305 + $0x4] sm:$0xf] %vm367, %v380
      %p382 = scmp.lt.s32.totalorder %s21, 1
      %s383 = scalar_select %p382, %s21, 1
      %p384 = scmp.lt.s32.totalorder %s22, 0
      %s385 = scalar_select %p384, %s22, 0
      %s386 = sadd.s32 %s385, %s383
      %s387 = smul.addr %s386, 8
      %s388 = scalar_lea.vmem %s6, %s387
      // Predicated region
      $region45: #{factorized_forward.3} parent=43 // pred_check
        %p389 = pneg %p189
      $region46: #{factorized_forward.3} parent=43 // pred_check_branch
        %391 = sbr.rel (%p389) target = $region48
      $region47: #{factorized_forward.3} parent=43 // pred_region
        _
      $region48: #{factorized_forward.3} parent=43 // pred_fallthru
        _
    $region44: #{factorized_forward.3} parent=5 // pred_fallthru
      _
    %p392 = scmp.le.s32.totalorder 2, %s12
    // Predicated region
    $region49: #{factorized_forward.3} parent=5 // pred_check
      %p393 = pneg %p392
    $region50: #{factorized_forward.3} parent=5 // pred_check_branch
      %395 = sbr.rel (%p393) target = $region52
    $region51: #{factorized_forward.3} parent=5 // pred_region
      %s396 = ssub.s32 %s12, 2
      // Predicated region
      $region53: #{factorized_forward.3} parent=51 // pred_check
        %p397 = pneg %p195
      $region54: #{factorized_forward.3} parent=51 // pred_check_branch
        %399 = sbr.rel (%p397) target = $region56
      $region55: #{factorized_forward.3} parent=51 // pred_region
        %p400 = scmp.lt.s32.totalorder %s23, 1
        %s401 = scalar_select %p400, %s23, 1
        %p402 = scmp.lt.s32.totalorder %s24, 0
        %s403 = scalar_select %p402, %s24, 0
        %s404 = sadd.s32 %s403, %s401
        %s405 = smul.addr %s404, 8
        %s406 = scalar_lea.vmem %s6, %s405
      $region56: #{factorized_forward.3} parent=51 // pred_fallthru
        _
    $region52: #{factorized_forward.3} parent=5 // pred_fallthru
      _
  $region6: #{factorized_forward.3} parent=0 // loop_footer
    %s16 = sadd.s32 1, %s12
  $region7: #{factorized_forward.3} parent=0 // loop_footer_branch
    %11 = sbr.rel target = $region3
  $region8: #{factorized_forward.3} parent=0 // loop_exit
    _

</llo_original>
